<compile_context>
chip_gen: v6e
topology: v6e:2x2x1
jax: 0.10.0
libtpu: 0.0.40
codegen_flags: <defaults>
</compile_context>

<pallas_src>
import functools

import jax
import jax.numpy as jnp
from jax.experimental import pallas as pl
from jax.experimental.pallas import tpu as pltpu

LANE = 128      # lane width of a vreg
SUBLANE = 8     # sublane count of a vreg
OUT_PAD = 8     # fc4 output columns padded to 8 (full-array last dim)


def _round_up(x, m):
    return (x + m - 1) // m * m


def mlp_kernel(state_ref, t_ref,
               w1s_ref, w1t_ref, b1_ref,
               w2_ref, b2_ref,
               w3_ref, b3_ref,
               w4_ref, b4_ref,
               o_ref, *, matmul_dtype):
    s = state_ref[...]                                              # [tb, 2]  f32
    t = t_ref[...]                                                  # [tb, 1]  f32

    # fc1 with the hstack fused, entirely on the VPU (broadcast-FMAs):
    #   x @ W1 + b1 == s[:,0]*W1[0] + s[:,1]*W1[1] + t*W1[2] + b1
    h = (s[:, 0:1] * w1s_ref[0:1, :]
         + s[:, 1:2] * w1s_ref[1:2, :]
         + t * w1t_ref[...]
         + b1_ref[...])
    h = jnp.maximum(h, 0.0)                                         # relu(fc1)

    def dense(x, w_ref, b_ref):
        return jnp.dot(x.astype(matmul_dtype), w_ref[...].astype(matmul_dtype),
                       preferred_element_type=jnp.float32) + b_ref[...]

    h = jnp.maximum(dense(h, w2_ref, b2_ref), 0.0)                  # relu(fc2)
    h = jnp.maximum(dense(h, w3_ref, b3_ref), 0.0)                  # relu(fc3)
    o = dense(h, w4_ref, b4_ref)                                    # fc4 (N=8, mostly padding-free)
    o_ref[...] = o.astype(o_ref.dtype)


def init_params(key, n_hidden):
    """nn.Linear-style U(-1/sqrt(fan_in), 1/sqrt(fan_in)) init.
    Weights stored [in, out]; biases [1, out]."""
    dims = [(3, n_hidden), (n_hidden, n_hidden), (n_hidden, n_hidden), (n_hidden, 2)]
    params = []
    for (fan_in, fan_out) in dims:
        key, kw, kb = jax.random.split(key, 3)
        bound = 1.0 / jnp.sqrt(jnp.float32(fan_in))
        w = jax.random.uniform(kw, (fan_in, fan_out), jnp.float32, -bound, bound)
        b = jax.random.uniform(kb, (1, fan_out), jnp.float32, -bound, bound)
        params.append((w, b))
    return params


def prepare_params(params):
    """Zero-pad hidden width to a multiple of 128 lanes, the output to 8 lanes,
    and split W1 into its state (rows 0:2) and t (row 2) parts for the fused fc1."""
    (w1, b1), (w2, b2), (w3, b3), (w4, b4) = params
    H = w1.shape[1]
    out_dim = w4.shape[1]
    Hp = _round_up(H, LANE)
    Np = _round_up(out_dim, OUT_PAD)

    def pad(a, shape):
        buf = jnp.zeros(shape, jnp.float32)
        return buf.at[:a.shape[0], :a.shape[1]].set(a.astype(jnp.float32))

    return {
        "w1s": pad(w1[:2], (2, Hp)),       # state part of fc1 (VPU FMAs)
        "w1t": pad(w1[2:3], (1, Hp)),      # t part of fc1 (VPU FMA)
        "b1": pad(b1, (1, Hp)),
        "w2": pad(w2, (Hp, Hp)), "b2": pad(b2, (1, Hp)),
        "w3": pad(w3, (Hp, Hp)), "b3": pad(b3, (1, Hp)),
        "w4": pad(w4, (Hp, Np)), "b4": pad(b4, (1, Np)),
        "Hp": Hp, "Np": Np, "out_dim": out_dim,
    }


def net_forward(state, t, pp, *, tile_b=4096, use_bf16=False):
    """state: [B, 2], t: [B, 1]  ->  [B, 2]."""
    B = state.shape[0]
    Hp, Np, out_dim = pp["Hp"], pp["Np"], pp["out_dim"]

    # Sublane-aligned batch tile.  If a single grid step would cover the whole
    # (large enough) batch, split it so both v7x TensorCores get work under
    # the "parallel" batch axis (harmless on 1-TC v5e/v6e).
    Bp0 = _round_up(B, SUBLANE)
    tb = min(_round_up(tile_b, SUBLANE), Bp0)
    if Bp0 // tb < 2 and Bp0 >= 2 * SUBLANE:
        tb = _round_up(pl.cdiv(Bp0, 2), SUBLANE)
    Bp = _round_up(B, tb)
    grid = (Bp // tb,)

    state_f = state.astype(jnp.float32)
    t_f = t.astype(jnp.float32)
    if Bp != B:
        state_f = jnp.pad(state_f, ((0, Bp - B), (0, 0)))
        t_f = jnp.pad(t_f, ((0, Bp - B), (0, 0)))

    # Weights/biases stay resident: constant index_map -> same block every step.
    const = lambda shape: pl.BlockSpec(shape, lambda i: (0, 0))
    row = lambda ncols: pl.BlockSpec((tb, ncols), lambda i: (i, 0))

    weight_elems = (2 * Hp + Hp + Hp              # w1s, w1t, b1
                    + Hp * Hp + Hp                # w2, b2
                    + Hp * Hp + Hp                # w3, b3
                    + Hp * Np + Np)               # w4, b4
    flops = 2 * Bp * (3 * Hp + Hp * Hp + Hp * Hp + Hp * Np)
    bytes_accessed = 4 * (Bp * 3 + Bp * Np + weight_elems)

    # Size the scoped-VMEM request to the real footprint (double-buffered
    # activations/output + resident weights + a few hidden-activation tiles),
    # capped well under the 64 MiB physical VMEM of a v7x TensorCore.
    vmem_need = 4 * (2 * tb * (2 + 1 + Np) + 2 * weight_elems + 4 * tb * Hp)
    vmem_limit = int(min(max(2 * vmem_need, 8 << 20), 32 << 20))

    kernel = functools.partial(
        mlp_kernel, matmul_dtype=jnp.bfloat16 if use_bf16 else jnp.float32)

    out = pl.pallas_call(
        kernel,
        out_shape=jax.ShapeDtypeStruct((Bp, Np), jnp.float32),
        grid=grid,
        in_specs=[
            row(2), row(1),
            const((2, Hp)), const((1, Hp)), const((1, Hp)),
            const((Hp, Hp)), const((1, Hp)),
            const((Hp, Hp)), const((1, Hp)),
            const((Hp, Np)), const((1, Np)),
        ],
        out_specs=row(Np),
        compiler_params=pltpu.CompilerParams(
            dimension_semantics=("parallel",),   # batch axis across TCs on v7x
            vmem_limit_bytes=vmem_limit,
        ),
        cost_estimate=pl.CostEstimate(
            flops=flops, transcendentals=0, bytes_accessed=bytes_accessed),
    )(state_f, t_f,
      pp["w1s"], pp["w1t"], pp["b1"],
      pp["w2"], pp["b2"],
      pp["w3"], pp["b3"],
      pp["w4"], pp["b4"])

    return out[:B, :out_dim]


if __name__ == "__main__":
    key = jax.random.PRNGKey(0)
    n_hidden = 100       # module default
    batch = 16

    key, ks, kt = jax.random.split(key, 3)
    state = jax.random.normal(ks, (batch, 2), jnp.float32)
    t = jax.random.normal(kt, (batch, 1), jnp.float32)

    params = init_params(key, n_hidden)
    pp = prepare_params(params)

    out = net_forward(state, t, pp)
    out = jax.block_until_ready(out)

    # Pure-JAX reference (same math, unpadded weights).
    x = jnp.concatenate([state, t], axis=1)
    (w1, b1), (w2, b2), (w3, b3), (w4, b4) = params
    ref = jnp.maximum(x @ w1 + b1, 0.0)
    ref = jnp.maximum(ref @ w2 + b2, 0.0)
    ref = jnp.maximum(ref @ w3 + b3, 0.0)
    ref = ref @ w4 + b4

    assert out.shape == (batch, 2)
    assert jnp.allclose(out, ref, atol=1e-4, rtol=1e-4)

    # Optional bf16-matmul fast path (looser numerics): smoke test only.
    out_bf16 = jax.block_until_ready(net_forward(state, t, pp, use_bf16=True))
    assert out_bf16.shape == (batch, 2)
    assert bool(jnp.all(jnp.isfinite(out_bf16)))

    print("KERNEL_OK")
</pallas_src>

<mosaic_0001>
module attributes {stable_mosaic.version = 11 : i64} {
  func.func @mlp_kernel(%arg0: i32, %arg1: memref<8x2xf32, #tpu.memory_space<vmem>>, %arg2: memref<8x1xf32, #tpu.memory_space<vmem>>, %arg3: memref<2x128xf32, #tpu.memory_space<vmem>>, %arg4: memref<1x128xf32, #tpu.memory_space<vmem>>, %arg5: memref<1x128xf32, #tpu.memory_space<vmem>>, %arg6: memref<128x128xf32, #tpu.memory_space<vmem>>, %arg7: memref<1x128xf32, #tpu.memory_space<vmem>>, %arg8: memref<128x128xf32, #tpu.memory_space<vmem>>, %arg9: memref<1x128xf32, #tpu.memory_space<vmem>>, %arg10: memref<128x8xf32, #tpu.memory_space<vmem>>, %arg11: memref<1x8xf32, #tpu.memory_space<vmem>>, %arg12: memref<8x8xf32, #tpu.memory_space<vmem>>) attributes {dimension_semantics = [#tpu.dimension_semantics<parallel>], iteration_bounds = array<i64: 2>, scalar_prefetch = 0 : i64, scratch_operands = 0 : i64, tpu.core_type = #tpu.core_type<tc>, window_params = [{transform_indices = @transform_0, window_bounds = array<i64: 8, 2>}, {transform_indices = @transform_1, window_bounds = array<i64: 8, 1>}, {pipeline_mode = #tpu.pipeline_mode<synchronous>, transform_indices = @transform_2, window_bounds = array<i64: 2, 128>}, {pipeline_mode = #tpu.pipeline_mode<synchronous>, transform_indices = @transform_3, window_bounds = array<i64: 1, 128>}, {pipeline_mode = #tpu.pipeline_mode<synchronous>, transform_indices = @transform_4, window_bounds = array<i64: 1, 128>}, {pipeline_mode = #tpu.pipeline_mode<synchronous>, transform_indices = @transform_5, window_bounds = array<i64: 128, 128>}, {pipeline_mode = #tpu.pipeline_mode<synchronous>, transform_indices = @transform_6, window_bounds = array<i64: 1, 128>}, {pipeline_mode = #tpu.pipeline_mode<synchronous>, transform_indices = @transform_7, window_bounds = array<i64: 128, 128>}, {pipeline_mode = #tpu.pipeline_mode<synchronous>, transform_indices = @transform_8, window_bounds = array<i64: 1, 128>}, {pipeline_mode = #tpu.pipeline_mode<synchronous>, transform_indices = @transform_9, window_bounds = array<i64: 128, 8>}, {pipeline_mode = #tpu.pipeline_mode<synchronous>, transform_indices = @transform_10, window_bounds = array<i64: 1, 8>}, {transform_indices = @transform_11, window_bounds = array<i64: 8, 8>}]} {
    %c0 = arith.constant 0 : index
    %c0_0 = arith.constant 0 : index
    %0 = vector.load %arg1[%c0, %c0_0] : memref<8x2xf32, #tpu.memory_space<vmem>>, vector<8x2xf32>
    %c0_1 = arith.constant 0 : index
    %c0_2 = arith.constant 0 : index
    %1 = vector.load %arg2[%c0_1, %c0_2] : memref<8x1xf32, #tpu.memory_space<vmem>>, vector<8x1xf32>
    %2 = vector.extract_strided_slice %0 {offsets = [0, 0], sizes = [8, 1], strides = [1, 1]} : vector<8x2xf32> to vector<8x1xf32>
    %c0_3 = arith.constant 0 : index
    %c0_4 = arith.constant 0 : index
    %3 = vector.load %arg3[%c0_3, %c0_4] : memref<2x128xf32, #tpu.memory_space<vmem>>, vector<1x128xf32>
    %4 = vector.broadcast %2 : vector<8x1xf32> to vector<8x128xf32>
    %5 = vector.broadcast %3 : vector<1x128xf32> to vector<8x128xf32>
    %6 = arith.mulf %4, %5 : vector<8x128xf32>
    %7 = vector.extract_strided_slice %0 {offsets = [0, 1], sizes = [8, 1], strides = [1, 1]} : vector<8x2xf32> to vector<8x1xf32>
    %c1 = arith.constant 1 : index
    %c0_5 = arith.constant 0 : index
    %8 = vector.load %arg3[%c1, %c0_5] : memref<2x128xf32, #tpu.memory_space<vmem>>, vector<1x128xf32>
    %9 = vector.broadcast %7 : vector<8x1xf32> to vector<8x128xf32>
    %10 = vector.broadcast %8 : vector<1x128xf32> to vector<8x128xf32>
    %11 = arith.mulf %9, %10 : vector<8x128xf32>
    %12 = arith.addf %6, %11 : vector<8x128xf32>
    %c0_6 = arith.constant 0 : index
    %c0_7 = arith.constant 0 : index
    %13 = vector.load %arg4[%c0_6, %c0_7] : memref<1x128xf32, #tpu.memory_space<vmem>>, vector<1x128xf32>
    %14 = vector.broadcast %1 : vector<8x1xf32> to vector<8x128xf32>
    %15 = vector.broadcast %13 : vector<1x128xf32> to vector<8x128xf32>
    %16 = arith.mulf %14, %15 : vector<8x128xf32>
    %17 = arith.addf %12, %16 : vector<8x128xf32>
    %c0_8 = arith.constant 0 : index
    %c0_9 = arith.constant 0 : index
    %18 = vector.load %arg5[%c0_8, %c0_9] : memref<1x128xf32, #tpu.memory_space<vmem>>, vector<1x128xf32>
    %19 = vector.broadcast %18 : vector<1x128xf32> to vector<8x128xf32>
    %20 = arith.addf %17, %19 : vector<8x128xf32>
    %cst = arith.constant 0.000000e+00 : f32
    %21 = vector.broadcast %cst : f32 to vector<8x128xf32>
    %22 = arith.maximumf %20, %21 : vector<8x128xf32>
    %c0_10 = arith.constant 0 : index
    %c0_11 = arith.constant 0 : index
    %23 = vector.load %arg6[%c0_10, %c0_11] : memref<128x128xf32, #tpu.memory_space<vmem>>, vector<128x128xf32>
    %cst_12 = arith.constant dense<0.000000e+00> : vector<8x128xf32>
    %24 = tpu.matmul %22, %23, %cst_12 {dimension_numbers = #tpu.dot_dimension_numbers<[1], [0], [0], [1], [0, 0, 1, 1], [], []>} : vector<8x128xf32>, vector<128x128xf32>, vector<8x128xf32> -> vector<8x128xf32>
    %c0_13 = arith.constant 0 : index
    %c0_14 = arith.constant 0 : index
    %25 = vector.load %arg7[%c0_13, %c0_14] : memref<1x128xf32, #tpu.memory_space<vmem>>, vector<1x128xf32>
    %26 = vector.broadcast %25 : vector<1x128xf32> to vector<8x128xf32>
    %27 = arith.addf %24, %26 : vector<8x128xf32>
    %cst_15 = arith.constant 0.000000e+00 : f32
    %28 = vector.broadcast %cst_15 : f32 to vector<8x128xf32>
    %29 = arith.maximumf %27, %28 : vector<8x128xf32>
    %c0_16 = arith.constant 0 : index
    %c0_17 = arith.constant 0 : index
    %30 = vector.load %arg8[%c0_16, %c0_17] : memref<128x128xf32, #tpu.memory_space<vmem>>, vector<128x128xf32>
    %cst_18 = arith.constant dense<0.000000e+00> : vector<8x128xf32>
    %31 = tpu.matmul %29, %30, %cst_18 {dimension_numbers = #tpu.dot_dimension_numbers<[1], [0], [0], [1], [0, 0, 1, 1], [], []>} : vector<8x128xf32>, vector<128x128xf32>, vector<8x128xf32> -> vector<8x128xf32>
    %c0_19 = arith.constant 0 : index
    %c0_20 = arith.constant 0 : index
    %32 = vector.load %arg9[%c0_19, %c0_20] : memref<1x128xf32, #tpu.memory_space<vmem>>, vector<1x128xf32>
    %33 = vector.broadcast %32 : vector<1x128xf32> to vector<8x128xf32>
    %34 = arith.addf %31, %33 : vector<8x128xf32>
    %cst_21 = arith.constant 0.000000e+00 : f32
    %35 = vector.broadcast %cst_21 : f32 to vector<8x128xf32>
    %36 = arith.maximumf %34, %35 : vector<8x128xf32>
    %c0_22 = arith.constant 0 : index
    %c0_23 = arith.constant 0 : index
    %37 = vector.load %arg10[%c0_22, %c0_23] : memref<128x8xf32, #tpu.memory_space<vmem>>, vector<128x8xf32>
    %cst_24 = arith.constant dense<0.000000e+00> : vector<8x8xf32>
    %38 = tpu.matmul %36, %37, %cst_24 {dimension_numbers = #tpu.dot_dimension_numbers<[1], [0], [0], [1], [0, 0, 1, 1], [], []>} : vector<8x128xf32>, vector<128x8xf32>, vector<8x8xf32> -> vector<8x8xf32>
    %c0_25 = arith.constant 0 : index
    %c0_26 = arith.constant 0 : index
    %39 = vector.load %arg11[%c0_25, %c0_26] : memref<1x8xf32, #tpu.memory_space<vmem>>, vector<1x8xf32>
    %40 = vector.broadcast %39 : vector<1x8xf32> to vector<8x8xf32>
    %41 = arith.addf %38, %40 : vector<8x8xf32>
    %c0_27 = arith.constant 0 : index
    %c0_28 = arith.constant 0 : index
    %42 = vector.load %arg12[%c0_27, %c0_28] : memref<8x8xf32, #tpu.memory_space<vmem>>, vector<8x8xf32>
    tpu.vector_store %arg12[%c0_27, %c0_28], %41 {strides = array<i32>} : memref<8x8xf32, #tpu.memory_space<vmem>>, vector<8x8xf32>,
    return
  }
  func.func @transform_0(%arg0: i32) -> (i32, i32) {
    %c0_i32 = arith.constant 0 : i32
    %c0_i32_0 = arith.constant 0 : i32
    return %arg0, %c0_i32 : i32, i32
  }
  func.func @transform_1(%arg0: i32) -> (i32, i32) {
    %c0_i32 = arith.constant 0 : i32
    %c0_i32_0 = arith.constant 0 : i32
    return %arg0, %c0_i32 : i32, i32
  }
  func.func @transform_2(%arg0: i32) -> (i32, i32) {
    %c0_i32 = arith.constant 0 : i32
    %c0_i32_0 = arith.constant 0 : i32
    %c0_i32_1 = arith.constant 0 : i32
    return %c0_i32, %c0_i32_0 : i32, i32
  }
  func.func @transform_3(%arg0: i32) -> (i32, i32) {
    %c0_i32 = arith.constant 0 : i32
    %c0_i32_0 = arith.constant 0 : i32
    %c0_i32_1 = arith.constant 0 : i32
    return %c0_i32, %c0_i32_0 : i32, i32
  }
  func.func @transform_4(%arg0: i32) -> (i32, i32) {
    %c0_i32 = arith.constant 0 : i32
    %c0_i32_0 = arith.constant 0 : i32
    %c0_i32_1 = arith.constant 0 : i32
    return %c0_i32, %c0_i32_0 : i32, i32
  }
  func.func @transform_5(%arg0: i32) -> (i32, i32) {
    %c0_i32 = arith.constant 0 : i32
    %c0_i32_0 = arith.constant 0 : i32
    %c0_i32_1 = arith.constant 0 : i32
    return %c0_i32, %c0_i32_0 : i32, i32
  }
  func.func @transform_6(%arg0: i32) -> (i32, i32) {
    %c0_i32 = arith.constant 0 : i32
    %c0_i32_0 = arith.constant 0 : i32
    %c0_i32_1 = arith.constant 0 : i32
    return %c0_i32, %c0_i32_0 : i32, i32
  }
  func.func @transform_7(%arg0: i32) -> (i32, i32) {
    %c0_i32 = arith.constant 0 : i32
    %c0_i32_0 = arith.constant 0 : i32
    %c0_i32_1 = arith.constant 0 : i32
    return %c0_i32, %c0_i32_0 : i32, i32
  }
  func.func @transform_8(%arg0: i32) -> (i32, i32) {
    %c0_i32 = arith.constant 0 : i32
    %c0_i32_0 = arith.constant 0 : i32
    %c0_i32_1 = arith.constant 0 : i32
    return %c0_i32, %c0_i32_0 : i32, i32
  }
  func.func @transform_9(%arg0: i32) -> (i32, i32) {
    %c0_i32 = arith.constant 0 : i32
    %c0_i32_0 = arith.constant 0 : i32
    %c0_i32_1 = arith.constant 0 : i32
    return %c0_i32, %c0_i32_0 : i32, i32
  }
  func.func @transform_10(%arg0: i32) -> (i32, i32) {
    %c0_i32 = arith.constant 0 : i32
    %c0_i32_0 = arith.constant 0 : i32
    %c0_i32_1 = arith.constant 0 : i32
    return %c0_i32, %c0_i32_0 : i32, i32
  }
  func.func @transform_11(%arg0: i32) -> (i32, i32) {
    %c0_i32 = arith.constant 0 : i32
    %c0_i32_0 = arith.constant 0 : i32
    return %arg0, %c0_i32 : i32, i32
  }
}

</mosaic_0001>

<llo_original>
// kernel: tpu_custom_call.1
$region0: #{tpu_custom_call.1}
  #allocation0 [shape = 'u32[]', space=smem, size = 0x4, offset = 0x4, fixed_abs, tag = 'smem constant byte address 0x4 - core index']
  #allocation1 [shape = 'u32[144,128]{1,0:T(1,128)}', space=vmem, size = 0x12000, scoped, tag = 'internal scratch']
  %s0 = inlined_call_operand.vmem [shape: f32[16,2], index: 0, kind: input, shape index: {}]
  %s1 = inlined_call_operand.vmem [shape: f32[16,1], index: 1, kind: input, shape index: {}]
  %s2 = inlined_call_operand.vmem [shape: f32[2,128], index: 2, kind: input, shape index: {}]
  %s3 = inlined_call_operand.vmem [shape: f32[1,128], index: 3, kind: input, shape index: {}]
  %s4 = inlined_call_operand.vmem [shape: f32[1,128], index: 4, kind: input, shape index: {}]
  %s5 = inlined_call_operand.vmem [shape: f32[128,128], index: 5, kind: input, shape index: {}]
  %s6 = inlined_call_operand.vmem [shape: f32[1,128], index: 6, kind: input, shape index: {}]
  %s7 = inlined_call_operand.hbm [shape: f32[128,128], index: 7, kind: input, shape index: {}]
  %s8 = inlined_call_operand.vmem [shape: f32[1,128], index: 8, kind: input, shape index: {}]
  %s9 = inlined_call_operand.vmem [shape: f32[128,8], index: 9, kind: input, shape index: {}]
  %s10 = inlined_call_operand.vmem [shape: f32[1,8], index: 10, kind: input, shape index: {}]
  %s11 = inlined_call_operand.vmem [shape: f32[16,8], index: 11, kind: output, shape index: {}]
  %s12 = sld [smem:[#allocation0]]
  $region81: #{tpu_custom_call.1} parent=0
    _
  %s14 = ssub.s32 1, %s12
  %s15 = scalar_select 0, %s14, %s12
  $region1: #{tpu_custom_call.1} parent=0
    #allocation2 [shape = 'u8[65536]{0}', space=vmem, size = 0x10000, scoped, tag = 'input window, operand 7, single buffered']
    #allocation3 [shape = 's32[2]{0}', space=sflag, size = 0x8, scoped, tag = 'scoped memory for tpu_custom_call.1']
    %16 = vsyncpa [#allocation3], 0
    loop: start=0, step=1, limit=4
    $region2: #{tpu_custom_call.1} parent=1 // loop_pre_header
      _
    $region3: #{tpu_custom_call.1} parent=1 // loop_header
      %s18 = sphi 0, %s22
      %p19 = scmp.ge.s32.totalorder %s18, 4
      %s28 = sphi 0, %s30
      %s31 = sphi 0, %s28
      %s32 = sphi 0, %s31
      %s48 = sphi 0, %s32
      %s54 = sphi 0, %s56
      %s57 = sphi 0, %s54
      %s58 = sphi 0, %s57
      %s74 = sphi 0, %s58
      %s78 = sphi 0, %s78
      %s80 = sphi 0, %s78
      %s81 = sphi 0, %s80
      %s95 = sphi 0, %s81
      %s99 = sphi 0, %s99
      %s101 = sphi 0, %s99
      %s102 = sphi 0, %s101
      %s116 = sphi 0, %s102
      %s120 = sphi 0, %s120
      %s122 = sphi 0, %s120
      %s123 = sphi 0, %s122
      %s137 = sphi 0, %s123
      %s141 = sphi 0, %s141
      %s143 = sphi 0, %s141
      %s144 = sphi 0, %s143
      %s158 = sphi 0, %s144
      %s162 = sphi 0, %s162
      %s164 = sphi 0, %s162
      %s165 = sphi 0, %s164
      %s179 = sphi 0, %s165
      %s183 = sphi 0, %s183
      %s185 = sphi 0, %s183
      %s186 = sphi 0, %s185
      %s200 = sphi 0, %s186
      %s204 = sphi 0, %s204
      %s206 = sphi 0, %s204
      %s207 = sphi 0, %s206
      %s221 = sphi 0, %s207
      %s225 = sphi 0, %s225
      %s227 = sphi 0, %s225
      %s228 = sphi 0, %s227
      %s242 = sphi 0, %s228
      %s246 = sphi 0, %s246
      %s248 = sphi 0, %s246
      %s249 = sphi 0, %s248
      %s263 = sphi 0, %s249
      %s269 = sphi 0, %s271
      %s272 = sphi 0, %s269
      %s273 = sphi 0, %s272
      %s289 = sphi 0, %s273
    $region4: #{tpu_custom_call.1} parent=1 // loop_header_branch
      %21 = sbr.rel (%p19) target = $region8
    $region5: #{tpu_custom_call.1} parent=1 // loop_body
      %s23 = ssub.s32 %s18, 1
      %s24 = ssub.s32 %s18, 2
      %s25 = sadd.s32 %s18, 1
      %s26 = ssub.s32 %s18, %s25
      %p27 = scmp.eq.s32.totalorder %s26, 0
      %s29 = sadd.s32 %s28, 1
      %s30 = scalar_select %p27, %s28, %s29
      %p33 = pneg %p27
      %p34 = scmp.eq.s32.totalorder %s18, 1
      %p35 = por %p33, %p34
      %p36 = scmp.ne.s32.totalorder %s28, %s31
      %p37 = scmp.eq.s32.totalorder %s18, 0
      %p38 = por %p36, %p37
      %p39 = scmp.ne.s32.totalorder %s28, %s31
      %p40 = scmp.eq.s32.totalorder %s23, 1
      %p41 = por %p39, %p40
      %p42 = scmp.ne.s32.totalorder %s31, %s32
      %p43 = scmp.eq.s32.totalorder %s23, 0
      %p44 = por %p42, %p43
      %p45 = scmp.ne.s32.totalorder %s31, %s32
      %p46 = scmp.eq.s32.totalorder %s24, 1
      %p47 = por %p45, %p46
      %p49 = scmp.ne.s32.totalorder %s32, %s48
      %p50 = scmp.eq.s32.totalorder %s24, 0
      %p51 = por %p49, %p50
      %s52 = ssub.s32 %s18, %s25
      %p53 = scmp.eq.s32.totalorder %s52, 0
      %s55 = sadd.s32 %s54, 1
      %s56 = scalar_select %p53, %s54, %s55
      %p59 = pneg %p53
      %p60 = scmp.eq.s32.totalorder %s18, 1
      %p61 = por %p59, %p60
      %p62 = scmp.ne.s32.totalorder %s54, %s57
      %p63 = scmp.eq.s32.totalorder %s18, 0
      %p64 = por %p62, %p63
      %p65 = scmp.ne.s32.totalorder %s54, %s57
      %p66 = scmp.eq.s32.totalorder %s23, 1
      %p67 = por %p65, %p66
      %p68 = scmp.ne.s32.totalorder %s57, %s58
      %p69 = scmp.eq.s32.totalorder %s23, 0
      %p70 = por %p68, %p69
      %p71 = scmp.ne.s32.totalorder %s57, %s58
      %p72 = scmp.eq.s32.totalorder %s24, 1
      %p73 = por %p71, %p72
      %p75 = scmp.ne.s32.totalorder %s58, %s74
      %p76 = scmp.eq.s32.totalorder %s24, 0
      %p77 = por %p75, %p76
      %s79 = sadd.s32 %s78, 1
      %p82 = scmp.eq.s32.totalorder %s18, 1
      %p83 = scmp.ne.s32.totalorder %s78, %s80
      %p84 = scmp.eq.s32.totalorder %s18, 0
      %p85 = por %p83, %p84
      %p86 = scmp.ne.s32.totalorder %s78, %s80
      %p87 = scmp.eq.s32.totalorder %s23, 1
      %p88 = por %p86, %p87
      %p89 = scmp.ne.s32.totalorder %s80, %s81
      %p90 = scmp.eq.s32.totalorder %s23, 0
      %p91 = por %p89, %p90
      %p92 = scmp.ne.s32.totalorder %s80, %s81
      %p93 = scmp.eq.s32.totalorder %s24, 1
      %p94 = por %p92, %p93
      %p96 = scmp.ne.s32.totalorder %s81, %s95
      %p97 = scmp.eq.s32.totalorder %s24, 0
      %p98 = por %p96, %p97
      %s100 = sadd.s32 %s99, 1
      %p103 = scmp.eq.s32.totalorder %s18, 1
      %p104 = scmp.ne.s32.totalorder %s99, %s101
      %p105 = scmp.eq.s32.totalorder %s18, 0
      %p106 = por %p104, %p105
      %p107 = scmp.ne.s32.totalorder %s99, %s101
      %p108 = scmp.eq.s32.totalorder %s23, 1
      %p109 = por %p107, %p108
      %p110 = scmp.ne.s32.totalorder %s101, %s102
      %p111 = scmp.eq.s32.totalorder %s23, 0
      %p112 = por %p110, %p111
      %p113 = scmp.ne.s32.totalorder %s101, %s102
      %p114 = scmp.eq.s32.totalorder %s24, 1
      %p115 = por %p113, %p114
      %p117 = scmp.ne.s32.totalorder %s102, %s116
      %p118 = scmp.eq.s32.totalorder %s24, 0
      %p119 = por %p117, %p118
      %s121 = sadd.s32 %s120, 1
      %p124 = scmp.eq.s32.totalorder %s18, 1
      %p125 = scmp.ne.s32.totalorder %s120, %s122
      %p126 = scmp.eq.s32.totalorder %s18, 0
      %p127 = por %p125, %p126
      %p128 = scmp.ne.s32.totalorder %s120, %s122
      %p129 = scmp.eq.s32.totalorder %s23, 1
      %p130 = por %p128, %p129
      %p131 = scmp.ne.s32.totalorder %s122, %s123
      %p132 = scmp.eq.s32.totalorder %s23, 0
      %p133 = por %p131, %p132
      %p134 = scmp.ne.s32.totalorder %s122, %s123
      %p135 = scmp.eq.s32.totalorder %s24, 1
      %p136 = por %p134, %p135
      %p138 = scmp.ne.s32.totalorder %s123, %s137
      %p139 = scmp.eq.s32.totalorder %s24, 0
      %p140 = por %p138, %p139
      %s142 = sadd.s32 %s141, 1
      %p145 = scmp.eq.s32.totalorder %s18, 1
      %p146 = scmp.ne.s32.totalorder %s141, %s143
      %p147 = scmp.eq.s32.totalorder %s18, 0
      %p148 = por %p146, %p147
      %p149 = scmp.ne.s32.totalorder %s141, %s143
      %p150 = scmp.eq.s32.totalorder %s23, 1
      %p151 = por %p149, %p150
      %p152 = scmp.ne.s32.totalorder %s143, %s144
      %p153 = scmp.eq.s32.totalorder %s23, 0
      %p154 = por %p152, %p153
      %p155 = scmp.ne.s32.totalorder %s143, %s144
      %p156 = scmp.eq.s32.totalorder %s24, 1
      %p157 = por %p155, %p156
      %p159 = scmp.ne.s32.totalorder %s144, %s158
      %p160 = scmp.eq.s32.totalorder %s24, 0
      %p161 = por %p159, %p160
      %s163 = sadd.s32 %s162, 1
      %p166 = scmp.eq.s32.totalorder %s18, 1
      %p167 = scmp.ne.s32.totalorder %s162, %s164
      %p168 = scmp.eq.s32.totalorder %s18, 0
      %p169 = por %p167, %p168
      %p170 = scmp.ne.s32.totalorder %s162, %s164
      %p171 = scmp.eq.s32.totalorder %s23, 1
      %p172 = por %p170, %p171
      %p173 = scmp.ne.s32.totalorder %s164, %s165
      %p174 = scmp.eq.s32.totalorder %s23, 0
      %p175 = por %p173, %p174
      %p176 = scmp.ne.s32.totalorder %s164, %s165
      %p177 = scmp.eq.s32.totalorder %s24, 1
      %p178 = por %p176, %p177
      %p180 = scmp.ne.s32.totalorder %s165, %s179
      %p181 = scmp.eq.s32.totalorder %s24, 0
      %p182 = por %p180, %p181
      %s184 = sadd.s32 %s183, 1
      %p187 = scmp.eq.s32.totalorder %s18, 1
      %p188 = scmp.ne.s32.totalorder %s183, %s185
      %p189 = scmp.eq.s32.totalorder %s18, 0
      %p190 = por %p188, %p189
      %p191 = scmp.ne.s32.totalorder %s183, %s185
      %p192 = scmp.eq.s32.totalorder %s23, 1
      %p193 = por %p191, %p192
      %p194 = scmp.ne.s32.totalorder %s185, %s186
      %p195 = scmp.eq.s32.totalorder %s23, 0
      %p196 = por %p194, %p195
      %p197 = scmp.ne.s32.totalorder %s185, %s186
      %p198 = scmp.eq.s32.totalorder %s24, 1
      %p199 = por %p197, %p198
      %p201 = scmp.ne.s32.totalorder %s186, %s200
      %p202 = scmp.eq.s32.totalorder %s24, 0
      %p203 = por %p201, %p202
      %s205 = sadd.s32 %s204, 1
      %p208 = scmp.eq.s32.totalorder %s18, 1
      %p209 = scmp.ne.s32.totalorder %s204, %s206
      %p210 = scmp.eq.s32.totalorder %s18, 0
      %p211 = por %p209, %p210
      %p212 = scmp.ne.s32.totalorder %s204, %s206
      %p213 = scmp.eq.s32.totalorder %s23, 1
      %p214 = por %p212, %p213
      %p215 = scmp.ne.s32.totalorder %s206, %s207
      %p216 = scmp.eq.s32.totalorder %s23, 0
      %p217 = por %p215, %p216
      %p218 = scmp.ne.s32.totalorder %s206, %s207
      %p219 = scmp.eq.s32.totalorder %s24, 1
      %p220 = por %p218, %p219
      %p222 = scmp.ne.s32.totalorder %s207, %s221
      %p223 = scmp.eq.s32.totalorder %s24, 0
      %p224 = por %p222, %p223
      %s226 = sadd.s32 %s225, 1
      %p229 = scmp.eq.s32.totalorder %s18, 1
      %p230 = scmp.ne.s32.totalorder %s225, %s227
      %p231 = scmp.eq.s32.totalorder %s18, 0
      %p232 = por %p230, %p231
      %p233 = scmp.ne.s32.totalorder %s225, %s227
      %p234 = scmp.eq.s32.totalorder %s23, 1
      %p235 = por %p233, %p234
      %p236 = scmp.ne.s32.totalorder %s227, %s228
      %p237 = scmp.eq.s32.totalorder %s23, 0
      %p238 = por %p236, %p237
      %p239 = scmp.ne.s32.totalorder %s227, %s228
      %p240 = scmp.eq.s32.totalorder %s24, 1
      %p241 = por %p239, %p240
      %p243 = scmp.ne.s32.totalorder %s228, %s242
      %p244 = scmp.eq.s32.totalorder %s24, 0
      %p245 = por %p243, %p244
      %s247 = sadd.s32 %s246, 1
      %p250 = scmp.eq.s32.totalorder %s18, 1
      %p251 = scmp.ne.s32.totalorder %s246, %s248
      %p252 = scmp.eq.s32.totalorder %s18, 0
      %p253 = por %p251, %p252
      %p254 = scmp.ne.s32.totalorder %s246, %s248
      %p255 = scmp.eq.s32.totalorder %s23, 1
      %p256 = por %p254, %p255
      %p257 = scmp.ne.s32.totalorder %s248, %s249
      %p258 = scmp.eq.s32.totalorder %s23, 0
      %p259 = por %p257, %p258
      %p260 = scmp.ne.s32.totalorder %s248, %s249
      %p261 = scmp.eq.s32.totalorder %s24, 1
      %p262 = por %p260, %p261
      %p264 = scmp.ne.s32.totalorder %s249, %s263
      %p265 = scmp.eq.s32.totalorder %s24, 0
      %p266 = por %p264, %p265
      %s267 = ssub.s32 %s18, %s25
      %p268 = scmp.eq.s32.totalorder %s267, 0
      %s270 = sadd.s32 %s269, 1
      %s271 = scalar_select %p268, %s269, %s270
      %p274 = pneg %p268
      %p275 = scmp.eq.s32.totalorder %s18, 1
      %p276 = por %p274, %p275
      %p277 = scmp.ne.s32.totalorder %s269, %s272
      %p278 = scmp.eq.s32.totalorder %s18, 0
      %p279 = por %p277, %p278
      %p280 = scmp.ne.s32.totalorder %s269, %s272
      %p281 = scmp.eq.s32.totalorder %s23, 1
      %p282 = por %p280, %p281
      %p283 = scmp.ne.s32.totalorder %s272, %s273
      %p284 = scmp.eq.s32.totalorder %s23, 0
      %p285 = por %p283, %p284
      %p286 = scmp.ne.s32.totalorder %s272, %s273
      %p287 = scmp.eq.s32.totalorder %s24, 1
      %p288 = por %p286, %p287
      %p290 = scmp.ne.s32.totalorder %s273, %s289
      %p291 = scmp.eq.s32.totalorder %s24, 0
      %p292 = por %p290, %p291
      %p293 = scmp.le.s32.totalorder 1, %s18
      %p294 = scmp.lt.s32.totalorder %s18, 3
      %p295 = pnand %p293, %p294
      %p296 = pneg %p295
      // Predicated region
      $region9: #{tpu_custom_call.1} parent=5 // pred_check
        _
      $region10: #{tpu_custom_call.1} parent=5 // pred_check_branch
        %298 = sbr.rel (%p295) target = $region12
      $region11: #{tpu_custom_call.1} parent=5 // pred_region
        %s299 = ssub.s32 %s18, 1
        // Predicated region
        $region13: #{tpu_custom_call.1} parent=11 // pred_check
          %p300 = pneg %p91
        $region14: #{tpu_custom_call.1} parent=11 // pred_check_branch
          %302 = sbr.rel (%p300) target = $region16
        $region15: #{tpu_custom_call.1} parent=11 // pred_region
          _
        $region16: #{tpu_custom_call.1} parent=11 // pred_fallthru
          _
        // Predicated region
        $region17: #{tpu_custom_call.1} parent=11 // pred_check
          %p303 = pneg %p112
        $region18: #{tpu_custom_call.1} parent=11 // pred_check_branch
          %305 = sbr.rel (%p303) target = $region20
        $region19: #{tpu_custom_call.1} parent=11 // pred_region
          _
        $region20: #{tpu_custom_call.1} parent=11 // pred_fallthru
          _
        // Predicated region
        $region21: #{tpu_custom_call.1} parent=11 // pred_check
          %p306 = pneg %p133
        $region22: #{tpu_custom_call.1} parent=11 // pred_check_branch
          %308 = sbr.rel (%p306) target = $region24
        $region23: #{tpu_custom_call.1} parent=11 // pred_region
          _
        $region24: #{tpu_custom_call.1} parent=11 // pred_fallthru
          _
        // Predicated region
        $region25: #{tpu_custom_call.1} parent=11 // pred_check
          %p309 = pneg %p154
        $region26: #{tpu_custom_call.1} parent=11 // pred_check_branch
          %311 = sbr.rel (%p309) target = $region28
        $region27: #{tpu_custom_call.1} parent=11 // pred_region
          _
        $region28: #{tpu_custom_call.1} parent=11 // pred_fallthru
          _
        // Predicated region
        $region29: #{tpu_custom_call.1} parent=11 // pred_check
          %p312 = pneg %p175
        $region30: #{tpu_custom_call.1} parent=11 // pred_check_branch
          %314 = sbr.rel (%p312) target = $region32
        $region31: #{tpu_custom_call.1} parent=11 // pred_region
          _
        $region32: #{tpu_custom_call.1} parent=11 // pred_fallthru
          _
        // Predicated region
        $region33: #{tpu_custom_call.1} parent=11 // pred_check
          %p315 = pneg %p196
        $region34: #{tpu_custom_call.1} parent=11 // pred_check_branch
          %317 = sbr.rel (%p315) target = $region36
        $region35: #{tpu_custom_call.1} parent=11 // pred_region
          %s319 = ssub.s32 2048, 2048
          %320 = vsyncadd [#allocation3], %s319
          %s321 = sshll.u32 [#allocation2], 4
          %s322 = int_to_ptr.vmem [resolvable:$true] %s321
          %327 = dma.hbm_to_vmem [thread:$0]  %s7, 2048, %s322, [#allocation3], 128, 128, 8
        $region36: #{tpu_custom_call.1} parent=11 // pred_fallthru
          _
        // Predicated region
        $region37: #{tpu_custom_call.1} parent=11 // pred_check
          %p328 = pneg %p217
        $region38: #{tpu_custom_call.1} parent=11 // pred_check_branch
          %330 = sbr.rel (%p328) target = $region40
        $region39: #{tpu_custom_call.1} parent=11 // pred_region
          _
        $region40: #{tpu_custom_call.1} parent=11 // pred_fallthru
          _
        // Predicated region
        $region41: #{tpu_custom_call.1} parent=11 // pred_check
          %p331 = pneg %p238
        $region42: #{tpu_custom_call.1} parent=11 // pred_check_branch
          %333 = sbr.rel (%p331) target = $region44
        $region43: #{tpu_custom_call.1} parent=11 // pred_region
          _
        $region44: #{tpu_custom_call.1} parent=11 // pred_fallthru
          _
        // Predicated region
        $region45: #{tpu_custom_call.1} parent=11 // pred_check
          %p334 = pneg %p259
        $region46: #{tpu_custom_call.1} parent=11 // pred_check_branch
          %336 = sbr.rel (%p334) target = $region48
        $region47: #{tpu_custom_call.1} parent=11 // pred_region
          _
        $region48: #{tpu_custom_call.1} parent=11 // pred_fallthru
          _
      $region12: #{tpu_custom_call.1} parent=5 // pred_fallthru
        _
      %p337 = scmp.lt.s32.totalorder %s18, 2
      // Predicated region
      $region49: #{tpu_custom_call.1} parent=5 // pred_check
        %p338 = pneg %p337
      $region50: #{tpu_custom_call.1} parent=5 // pred_check_branch
        %340 = sbr.rel (%p338) target = $region52
      $region51: #{tpu_custom_call.1} parent=5 // pred_region
        // Predicated region
        $region53: #{tpu_custom_call.1} parent=51 // pred_check
          %p341 = pneg %p38
        $region54: #{tpu_custom_call.1} parent=51 // pred_check_branch
          %343 = sbr.rel (%p341) target = $region56
        $region55: #{tpu_custom_call.1} parent=51 // pred_region
          %p344 = scmp.lt.s32.totalorder %s18, 1
          %s345 = scalar_select %p344, %s18, 1
          %s346 = smul.addr %s345, 8
          %s347 = scalar_lea.vmem %s0, %s346
        $region56: #{tpu_custom_call.1} parent=51 // pred_fallthru
          _
        // Predicated region
        $region57: #{tpu_custom_call.1} parent=51 // pred_check
          %p348 = pneg %p64
        $region58: #{tpu_custom_call.1} parent=51 // pred_check_branch
          %350 = sbr.rel (%p348) target = $region60
        $region59: #{tpu_custom_call.1} parent=51 // pred_region
          %p351 = scmp.lt.s32.totalorder %s18, 1
          %s352 = scalar_select %p351, %s18, 1
          %s353 = smul.addr %s352, 8
          %s354 = scalar_lea.vmem %s1, %s353
        $region60: #{tpu_custom_call.1} parent=51 // pred_fallthru
          _
      $region52: #{tpu_custom_call.1} parent=5 // pred_fallthru
        _
      %p355 = scmp.le.s32.totalorder 1, %s18
      %p356 = scmp.lt.s32.totalorder %s18, 3
      %p357 = pnand %p355, %p356
      %p358 = pneg %p357
      // Predicated region
      $region61: #{tpu_custom_call.1} parent=5 // pred_check
        _
      $region62: #{tpu_custom_call.1} parent=5 // pred_check_branch
        %360 = sbr.rel (%p357) target = $region64
      $region63: #{tpu_custom_call.1} parent=5 // pred_region
        %s361 = ssub.s32 %s18, 1
        // Predicated region
        $region65: #{tpu_custom_call.1} parent=63 // pred_check
          %p362 = pneg %p196
        $region66: #{tpu_custom_call.1} parent=63 // pred_check_branch
          %364 = sbr.rel (%p362) target = $region68
        $region67: #{tpu_custom_call.1} parent=63 // pred_region
          %365 = dma.done [#allocation3], 2048
        $region68: #{tpu_custom_call.1} parent=63 // pred_fallthru
          _
        %p366 = scmp.lt.s32.totalorder %s23, 1
        %s367 = scalar_select %p366, %s23, 1
        %s368 = smul.addr %s367, 8
        %s369 = scalar_lea.vmem %s0, %s368
        %p370 = pneg %p44
        %p371 = pneg %p41
        %p372 = scmp.lt.s32.totalorder %s23, 1
        %s373 = scalar_select %p372, %s23, 1
        %s374 = smul.addr %s373, 8
        %s375 = scalar_lea.vmem %s1, %s374
        %p376 = pneg %p70
        %p377 = pneg %p67
        %p378 = pneg %p91
        %p379 = pneg %p88
        %p380 = pneg %p112
        %p381 = pneg %p109
        %p382 = pneg %p133
        %p383 = pneg %p130
        %p384 = pneg %p154
        %p385 = pneg %p151
        %p386 = pneg %p175
        %p387 = pneg %p172
        %p388 = pneg %p196
        %p389 = pneg %p193
        %p390 = pneg %p217
        %p391 = pneg %p214
        %p392 = pneg %p238
        %p393 = pneg %p235
        %p394 = pneg %p259
        %p395 = pneg %p256
        %p396 = pneg %p285
        %p397 = pneg %p282
        %p398 = scmp.lt.s32.totalorder %s23, 1
        %s399 = scalar_select %p398, %s23, 1
        %s400 = smul.addr %s399, 8
        %s401 = scalar_lea.vmem %s11, %s400
        %p402 = scmp.lt.s32.totalorder %s23, 1
        %s403 = scalar_select %p402, %s23, 1
        %s404 = smul.addr %s403, 8
        %s405 = scalar_lea.vmem %s0, %s404
        %p406 = scmp.lt.s32.totalorder %s23, 1
        %s407 = scalar_select %p406, %s23, 1
        %s408 = smul.addr %s407, 8
        %s409 = scalar_lea.vmem %s1, %s408
        %p410 = scmp.lt.s32.totalorder %s23, 1
        %s411 = scalar_select %p410, %s23, 1
        %s412 = smul.addr %s411, 8
        %s413 = scalar_lea.vmem %s11, %s412
        %v414 = vld [vmem:[%s405] sm:$0xff]
        %v415 = vld [vmem:[%s409] sm:$0xff]
        %v416 = vld [vmem:[%s2] sm:$0x1]
        %418 = vset.pattern.permute.xlu0 0
        %419 = vperm.xlu0 %418, %v414
        %v420 = vpop.permute.xlu0 %419
        %v422 = vlaneseq
        %v423 = vshrl.u32 %v422, 7
        %v424 = vsub.s32 0, %v423
        %v425 = vrot.slane %v416, %v424
        %v426 = vmul.f32 %v420, %v425
        %v427 = vld [vmem:[%s2 + $0x1] sm:$0x1]
        %428 = vset.pattern.permute.xlu0 1
        %429 = vperm.xlu0 %428, %v414
        %v430 = vpop.permute.xlu0 %429
        %v432 = vlaneseq
        %v433 = vshrl.u32 %v432, 7
        %v434 = vsub.s32 0, %v433
        %v435 = vrot.slane %v427, %v434
        %v436 = vmul.f32 %v430, %v435
        %v437 = vadd.f32 %v426, %v436
        %v438 = vld [vmem:[%s3] sm:$0x1]
        %440 = vset.pattern.permute.xlu0 0
        %441 = vperm.xlu0 %440, %v415
        %v442 = vpop.permute.xlu0 %441
        %v445 = vlaneseq
        %v446 = vshrl.u32 %v445, 7
        %v447 = vsub.s32 0, %v446
        %v448 = vrot.slane %v438, %v447
        %v450 = vmul.f32 %v442, %v448
        %v451 = vadd.f32 %v437, %v450
        %v452 = vld [vmem:[%s4] sm:$0x1]
        %v454 = vlaneseq
        %v455 = vshrl.u32 %v454, 7
        %v456 = vsub.s32 0, %v455
        %v457 = vrot.slane %v452, %v456
        %v459 = vadd.f32 %v451, %v457
        %v460 = vmax.f32 %v459, 0.0
        %v461 = vld [vmem:[%s5] sm:$0xff]
        %v462 = vld [vmem:[%s5 + $0x8] sm:$0xff]
        %v463 = vld [vmem:[%s5 + $0x10] sm:$0xff]
        %v464 = vld [vmem:[%s5 + $0x18] sm:$0xff]
        %v465 = vld [vmem:[%s5 + $0x20] sm:$0xff]
        %v466 = vld [vmem:[%s5 + $0x28] sm:$0xff]
        %v467 = vld [vmem:[%s5 + $0x30] sm:$0xff]
        %v468 = vld [vmem:[%s5 + $0x38] sm:$0xff]
        %v469 = vld [vmem:[%s5 + $0x40] sm:$0xff]
        %v470 = vld [vmem:[%s5 + $0x48] sm:$0xff]
        %v471 = vld [vmem:[%s5 + $0x50] sm:$0xff]
        %v472 = vld [vmem:[%s5 + $0x58] sm:$0xff]
        %v473 = vld [vmem:[%s5 + $0x60] sm:$0xff]
        %v474 = vld [vmem:[%s5 + $0x68] sm:$0xff]
        %v475 = vld [vmem:[%s5 + $0x70] sm:$0xff]
        %v476 = vld [vmem:[%s5 + $0x78] sm:$0xff]
        %v477 = vld [vmem:[%s6] sm:$0x1]
        %v479 = vlaneseq
        %v480 = vshrl.u32 %v479, 7
        %v481 = vsub.s32 0, %v480
        %v482 = vrot.slane %v477, %v481
        %484 = vmatprep.subr.mxu0 0.0
        %485 = vmatpush1.msra.mxu0 %v476
        %486 = vmatprep.subr.mxu0 0.0
        %487 = vmatpush1.msra.mxu0 %v475
        %488 = vmatprep.subr.mxu0 0.0
        %489 = vmatpush1.msra.mxu0 %v474
        %490 = vmatprep.subr.mxu0 0.0
        %491 = vmatpush1.msra.mxu0 %v473
        %492 = vmatprep.subr.mxu0 0.0
        %493 = vmatpush1.msra.mxu0 %v472
        %494 = vmatprep.subr.mxu0 0.0
        %495 = vmatpush1.msra.mxu0 %v471
        %496 = vmatprep.subr.mxu0 0.0
        %497 = vmatpush1.msra.mxu0 %v470
        %498 = vmatprep.subr.mxu0 0.0
        %499 = vmatpush1.msra.mxu0 %v469
        %500 = vmatprep.subr.mxu0 0.0
        %501 = vmatpush1.msra.mxu0 %v468
        %502 = vmatprep.subr.mxu0 0.0
        %503 = vmatpush1.msra.mxu0 %v467
        %504 = vmatprep.subr.mxu0 0.0
        %505 = vmatpush1.msra.mxu0 %v466
        %506 = vmatprep.subr.mxu0 0.0
        %507 = vmatpush1.msra.mxu0 %v465
        %508 = vmatprep.subr.mxu0 0.0
        %509 = vmatpush1.msra.mxu0 %v464
        %510 = vmatprep.subr.mxu0 0.0
        %511 = vmatpush1.msra.mxu0 %v463
        %512 = vmatprep.subr.mxu0 0.0
        %513 = vmatpush1.msra.mxu0 %v462
        %514 = vmatprep.subr.mxu0 0.0
        %515 = vmatpush1.msra.mxu0 %v461
        %516 = vmatprep.subr.mxu0 0.0
        %517 = vmatpush2.msra.mxu0 0.0
        %518 = vmatprep.subr.mxu0 0.0
        %519 = vmatpush2.msra.mxu0 0.0
        %520 = vmatprep.subr.mxu0 0.0
        %521 = vmatpush2.msra.mxu0 0.0
        %522 = vmatprep.subr.mxu0 0.0
        %523 = vmatpush2.msra.mxu0 0.0
        %524 = vmatprep.subr.mxu0 0.0
        %525 = vmatpush2.msra.mxu0 0.0
        %526 = vmatprep.subr.mxu0 0.0
        %527 = vmatpush2.msra.mxu0 0.0
        %528 = vmatprep.subr.mxu0 0.0
        %529 = vmatpush2.msra.mxu0 0.0
        %530 = vmatprep.subr.mxu0 0.0
        %531 = vmatpush2.msra.mxu0 0.0
        %532 = vmatprep.subr.mxu0 0.0
        %533 = vmatpush2.msra.mxu0 0.0
        %534 = vmatprep.subr.mxu0 0.0
        %535 = vmatpush2.msra.mxu0 0.0
        %536 = vmatprep.subr.mxu0 0.0
        %537 = vmatpush2.msra.mxu0 0.0
        %538 = vmatprep.subr.mxu0 0.0
        %539 = vmatpush2.msra.mxu0 0.0
        %540 = vmatprep.subr.mxu0 0.0
        %541 = vmatpush2.msra.mxu0 0.0
        %542 = vmatprep.subr.mxu0 0.0
        %543 = vmatpush2.msra.mxu0 0.0
        %544 = vmatprep.subr.mxu0 0.0
        %545 = vmatpush2.msra.mxu0 0.0
        %546 = vmatprep.subr.mxu0 0.0
        %547 = vmatpush2.msra.mxu0 0.0
        %548 = vmatprep.mubr.f32.mxu0 0.0
        %549 = vmatmul.mubr.f32.gmra.mxu0 %v460
        %v550 = vpop.f32.mrf.mxu0
        %v551 = vadd.f32 %v482, %v550
        %v552 = vpop.f32.mrf.mxu0
        %553 = vdwg.mxu0
        %v554 = vmax.f32 %v551, 0.0
        %v555 = vld [vmem:[#allocation2] sm:$0xff]
        %v556 = vld [vmem:[#allocation2 + $0x8] sm:$0xff]
        %v557 = vld [vmem:[#allocation2 + $0x10] sm:$0xff]
        %v558 = vld [vmem:[#allocation2 + $0x18] sm:$0xff]
        %v559 = vld [vmem:[#allocation2 + $0x20] sm:$0xff]
        %v560 = vld [vmem:[#allocation2 + $0x28] sm:$0xff]
        %v561 = vld [vmem:[#allocation2 + $0x30] sm:$0xff]
        %v562 = vld [vmem:[#allocation2 + $0x38] sm:$0xff]
        %v563 = vld [vmem:[#allocation2 + $0x40] sm:$0xff]
        %v564 = vld [vmem:[#allocation2 + $0x48] sm:$0xff]
        %v565 = vld [vmem:[#allocation2 + $0x50] sm:$0xff]
        %v566 = vld [vmem:[#allocation2 + $0x58] sm:$0xff]
        %v567 = vld [vmem:[#allocation2 + $0x60] sm:$0xff]
        %v568 = vld [vmem:[#allocation2 + $0x68] sm:$0xff]
        %v569 = vld [vmem:[#allocation2 + $0x70] sm:$0xff]
        %v570 = vld [vmem:[#allocation2 + $0x78] sm:$0xff]
        %v571 = vld [vmem:[%s8] sm:$0x1]
        %v573 = vlaneseq
        %v574 = vshrl.u32 %v573, 7
        %v575 = vsub.s32 0, %v574
        %v576 = vrot.slane %v571, %v575
        %578 = vmatprep.subr.mxu0 0.0
        %579 = vmatpush1.msra.mxu0 %v570
        %580 = vmatprep.subr.mxu0 0.0
        %581 = vmatpush1.msra.mxu0 %v569
        %582 = vmatprep.subr.mxu0 0.0
        %583 = vmatpush1.msra.mxu0 %v568
        %584 = vmatprep.subr.mxu0 0.0
        %585 = vmatpush1.msra.mxu0 %v567
        %586 = vmatprep.subr.mxu0 0.0
        %587 = vmatpush1.msra.mxu0 %v566
        %588 = vmatprep.subr.mxu0 0.0
        %589 = vmatpush1.msra.mxu0 %v565
        %590 = vmatprep.subr.mxu0 0.0
        %591 = vmatpush1.msra.mxu0 %v564
        %592 = vmatprep.subr.mxu0 0.0
        %593 = vmatpush1.msra.mxu0 %v563
        %594 = vmatprep.subr.mxu0 0.0
        %595 = vmatpush1.msra.mxu0 %v562
        %596 = vmatprep.subr.mxu0 0.0
        %597 = vmatpush1.msra.mxu0 %v561
        %598 = vmatprep.subr.mxu0 0.0
        %599 = vmatpush1.msra.mxu0 %v560
        %600 = vmatprep.subr.mxu0 0.0
        %601 = vmatpush1.msra.mxu0 %v559
        %602 = vmatprep.subr.mxu0 0.0
        %603 = vmatpush1.msra.mxu0 %v558
        %604 = vmatprep.subr.mxu0 0.0
        %605 = vmatpush1.msra.mxu0 %v557
        %606 = vmatprep.subr.mxu0 0.0
        %607 = vmatpush1.msra.mxu0 %v556
        %608 = vmatprep.subr.mxu0 0.0
        %609 = vmatpush1.msra.mxu0 %v555
        %610 = vmatprep.subr.mxu0 0.0
        %611 = vmatpush2.msra.mxu0 0.0
        %612 = vmatprep.subr.mxu0 0.0
        %613 = vmatpush2.msra.mxu0 0.0
        %614 = vmatprep.subr.mxu0 0.0
        %615 = vmatpush2.msra.mxu0 0.0
        %616 = vmatprep.subr.mxu0 0.0
        %617 = vmatpush2.msra.mxu0 0.0
        %618 = vmatprep.subr.mxu0 0.0
        %619 = vmatpush2.msra.mxu0 0.0
        %620 = vmatprep.subr.mxu0 0.0
        %621 = vmatpush2.msra.mxu0 0.0
        %622 = vmatprep.subr.mxu0 0.0
        %623 = vmatpush2.msra.mxu0 0.0
        %624 = vmatprep.subr.mxu0 0.0
        %625 = vmatpush2.msra.mxu0 0.0
        %626 = vmatprep.subr.mxu0 0.0
        %627 = vmatpush2.msra.mxu0 0.0
        %628 = vmatprep.subr.mxu0 0.0
        %629 = vmatpush2.msra.mxu0 0.0
        %630 = vmatprep.subr.mxu0 0.0
        %631 = vmatpush2.msra.mxu0 0.0
        %632 = vmatprep.subr.mxu0 0.0
        %633 = vmatpush2.msra.mxu0 0.0
        %634 = vmatprep.subr.mxu0 0.0
        %635 = vmatpush2.msra.mxu0 0.0
        %636 = vmatprep.subr.mxu0 0.0
        %637 = vmatpush2.msra.mxu0 0.0
        %638 = vmatprep.subr.mxu0 0.0
        %639 = vmatpush2.msra.mxu0 0.0
        %640 = vmatprep.subr.mxu0 0.0
        %641 = vmatpush2.msra.mxu0 0.0
        %642 = vmatprep.mubr.f32.mxu0 0.0
        %643 = vmatmul.mubr.f32.gmra.mxu0 %v554
        %v644 = vpop.f32.mrf.mxu0
        %v645 = vadd.f32 %v576, %v644
        %v646 = vpop.f32.mrf.mxu0
        %647 = vdwg.mxu0
        %v648 = vmax.f32 %v645, 0.0
        %v649 = vld [vmem:[%s9] sm:$0xff]
        %v650 = vld [vmem:[%s9 + $0x8] sm:$0xff]
        %v651 = vld [vmem:[%s9 + $0x10] sm:$0xff]
        %v652 = vld [vmem:[%s9 + $0x18] sm:$0xff]
        %v653 = vld [vmem:[%s9 + $0x20] sm:$0xff]
        %v654 = vld [vmem:[%s9 + $0x28] sm:$0xff]
        %v655 = vld [vmem:[%s9 + $0x30] sm:$0xff]
        %v656 = vld [vmem:[%s9 + $0x38] sm:$0xff]
        %v657 = vld [vmem:[%s9 + $0x40] sm:$0xff]
        %v658 = vld [vmem:[%s9 + $0x48] sm:$0xff]
        %v659 = vld [vmem:[%s9 + $0x50] sm:$0xff]
        %v660 = vld [vmem:[%s9 + $0x58] sm:$0xff]
        %v661 = vld [vmem:[%s9 + $0x60] sm:$0xff]
        %v662 = vld [vmem:[%s9 + $0x68] sm:$0xff]
        %v663 = vld [vmem:[%s9 + $0x70] sm:$0xff]
        %v664 = vld [vmem:[%s9 + $0x78] sm:$0xff]
        %v665 = vld [vmem:[%s10] sm:$0x1]
        %v667 = vlaneseq
        %v668 = vshrl.u32 %v667, 7
        %v669 = vsub.s32 0, %v668
        %v670 = vrot.slane %v665, %v669
        %672 = vmatprep.subr.mxu0 0.0
        %673 = vmatpush1.msra.mxu0 %v664
        %674 = vmatprep.subr.mxu0 0.0
        %675 = vmatpush1.msra.mxu0 %v663
        %676 = vmatprep.subr.mxu0 0.0
        %677 = vmatpush1.msra.mxu0 %v662
        %678 = vmatprep.subr.mxu0 0.0
        %679 = vmatpush1.msra.mxu0 %v661
        %680 = vmatprep.subr.mxu0 0.0
        %681 = vmatpush1.msra.mxu0 %v660
        %682 = vmatprep.subr.mxu0 0.0
        %683 = vmatpush1.msra.mxu0 %v659
        %684 = vmatprep.subr.mxu0 0.0
        %685 = vmatpush1.msra.mxu0 %v658
        %686 = vmatprep.subr.mxu0 0.0
        %687 = vmatpush1.msra.mxu0 %v657
        %688 = vmatprep.subr.mxu0 0.0
        %689 = vmatpush1.msra.mxu0 %v656
        %690 = vmatprep.subr.mxu0 0.0
        %691 = vmatpush1.msra.mxu0 %v655
        %692 = vmatprep.subr.mxu0 0.0
        %693 = vmatpush1.msra.mxu0 %v654
        %694 = vmatprep.subr.mxu0 0.0
        %695 = vmatpush1.msra.mxu0 %v653
        %696 = vmatprep.subr.mxu0 0.0
        %697 = vmatpush1.msra.mxu0 %v652
        %698 = vmatprep.subr.mxu0 0.0
        %699 = vmatpush1.msra.mxu0 %v651
        %700 = vmatprep.subr.mxu0 0.0
        %701 = vmatpush1.msra.mxu0 %v650
        %702 = vmatprep.subr.mxu0 0.0
        %703 = vmatpush1.msra.mxu0 %v649
        %704 = vmatprep.subr.mxu0 0.0
        %705 = vmatpush2.msra.mxu0 0.0
        %706 = vmatprep.subr.mxu0 0.0
        %707 = vmatpush2.msra.mxu0 0.0
        %708 = vmatprep.subr.mxu0 0.0
        %709 = vmatpush2.msra.mxu0 0.0
        %710 = vmatprep.subr.mxu0 0.0
        %711 = vmatpush2.msra.mxu0 0.0
        %712 = vmatprep.subr.mxu0 0.0
        %713 = vmatpush2.msra.mxu0 0.0
        %714 = vmatprep.subr.mxu0 0.0
        %715 = vmatpush2.msra.mxu0 0.0
        %716 = vmatprep.subr.mxu0 0.0
        %717 = vmatpush2.msra.mxu0 0.0
        %718 = vmatprep.subr.mxu0 0.0
        %719 = vmatpush2.msra.mxu0 0.0
        %720 = vmatprep.subr.mxu0 0.0
        %721 = vmatpush2.msra.mxu0 0.0
        %722 = vmatprep.subr.mxu0 0.0
        %723 = vmatpush2.msra.mxu0 0.0
        %724 = vmatprep.subr.mxu0 0.0
        %725 = vmatpush2.msra.mxu0 0.0
        %726 = vmatprep.subr.mxu0 0.0
        %727 = vmatpush2.msra.mxu0 0.0
        %728 = vmatprep.subr.mxu0 0.0
        %729 = vmatpush2.msra.mxu0 0.0
        %730 = vmatprep.subr.mxu0 0.0
        %731 = vmatpush2.msra.mxu0 0.0
        %732 = vmatprep.subr.mxu0 0.0
        %733 = vmatpush2.msra.mxu0 0.0
        %734 = vmatprep.subr.mxu0 0.0
        %735 = vmatpush2.msra.mxu0 0.0
        %736 = vmatprep.mubr.f32.mxu0 0.0
        %737 = vmatmul.mubr.f32.gmra.mxu0 %v648
        %v738 = vpop.f32.mrf.mxu0
        %v739 = vadd.f32 %v670, %v738
        %v740 = vpop.f32.mrf.mxu0
        %741 = vdwg.mxu0
        %vm742 = vcmask 64512
        %743 = vst.msk [vmem:[%s413] sm:$0xff] %vm742, %v739
        %p744 = scmp.lt.s32.totalorder %s23, 1
        %s745 = scalar_select %p744, %s23, 1
        %s746 = smul.addr %s745, 8
        %s747 = scalar_lea.vmem %s11, %s746
        // Predicated region
        $region69: #{tpu_custom_call.1} parent=63 // pred_check
          %p748 = pneg %p282
        $region70: #{tpu_custom_call.1} parent=63 // pred_check_branch
          %750 = sbr.rel (%p748) target = $region72
        $region71: #{tpu_custom_call.1} parent=63 // pred_region
          _
        $region72: #{tpu_custom_call.1} parent=63 // pred_fallthru
          _
      $region64: #{tpu_custom_call.1} parent=5 // pred_fallthru
        _
      %p751 = scmp.le.s32.totalorder 2, %s18
      // Predicated region
      $region73: #{tpu_custom_call.1} parent=5 // pred_check
        %p752 = pneg %p751
      $region74: #{tpu_custom_call.1} parent=5 // pred_check_branch
        %754 = sbr.rel (%p752) target = $region76
      $region75: #{tpu_custom_call.1} parent=5 // pred_region
        %s755 = ssub.s32 %s18, 2
        // Predicated region
        $region77: #{tpu_custom_call.1} parent=75 // pred_check
          %p756 = pneg %p288
        $region78: #{tpu_custom_call.1} parent=75 // pred_check_branch
          %758 = sbr.rel (%p756) target = $region80
        $region79: #{tpu_custom_call.1} parent=75 // pred_region
          %p759 = scmp.lt.s32.totalorder %s24, 1
          %s760 = scalar_select %p759, %s24, 1
          %s761 = smul.addr %s760, 8
          %s762 = scalar_lea.vmem %s11, %s761
        $region80: #{tpu_custom_call.1} parent=75 // pred_fallthru
          _
      $region76: #{tpu_custom_call.1} parent=5 // pred_fallthru
        _
    $region6: #{tpu_custom_call.1} parent=1 // loop_footer
      %s22 = sadd.s32 1, %s18
    $region7: #{tpu_custom_call.1} parent=1 // loop_footer_branch
      %17 = sbr.rel target = $region3
    $region8: #{tpu_custom_call.1} parent=1 // loop_exit
      _
    %763 = vsyncpa [#allocation3], 1
    %s764 = scalar_lea.sflag [#allocation3], 1
    %765 = vsyncpa %s764, 1

</llo_original>
